<compile_context>
chip_gen: v7x
topology: tpu7x:2x2x1
jax: 0.10.0
libtpu: 0.0.40
codegen_flags: <defaults>
</compile_context>

<pallas_src>
import jax
import jax.numpy as jnp
from jax.experimental import pallas as pl
from jax.experimental.pallas import tpu as pltpu


def _make_mlp_critic_kernel(num_linear_layers):
    """Kernel for an MLP with `num_linear_layers` Linear layers (ReLU hidden,
    Linear output), evaluated in transposed orientation:
        h^T <- relu(W_i @ h^T + b_i)     for hidden layers
        v   <- w_last @ h^T + b_last     (1, TILE_B) lane-dense row
    """

    def kernel(*refs):
        phi_t_ref = refs[0]                  # (D_in, TILE_B)
        out_ref = refs[-1]                   # (1, TILE_B)
        wb_refs = refs[1:-1]                 # w1, b1, ..., w_last, b_last

        h = phi_t_ref[...]                   # (D_in, TILE_B)
        for i in range(num_linear_layers - 1):
            w = wb_refs[2 * i][...]          # (out, in)  -- PyTorch layout
            b = wb_refs[2 * i + 1][...]      # (out, 1)
            h = jnp.dot(w, h, preferred_element_type=jnp.float32) + b
            h = jnp.maximum(h, 0.0)          # ReLU hidden activation

        w_last = wb_refs[-2][...]            # (1, H_last)
        b_last = wb_refs[-1][...]            # (1, 1)
        v = jnp.dot(w_last, h, preferred_element_type=jnp.float32) + b_last
        out_ref[...] = v.astype(out_ref.dtype)   # (1, TILE_B) unmasked lane store

    return kernel


def mlp_critic_forward(phi, params, *, tile_b=128):
    """MLPCritic.forward: phi (B, D_in) -> value (B,) via one batch-tiled Pallas kernel.

    `params` is a list of (W, b) with W in PyTorch layout (out_features, in_features)
    and b as (out_features, 1); the last layer has out_features == 1.
    """
    assert phi.ndim == 2
    B, d_in = phi.shape
    num_layers = len(params)
    assert params[-1][0].shape[0] == 1, "last layer must have out_features == 1"

    # Pad batch to a multiple of tile_b (padded columns compute garbage, discarded below),
    # then transpose once so the batch axis is the lane axis inside the kernel.
    pB = pl.cdiv(B, tile_b) * tile_b
    phi_p = jnp.pad(phi, ((0, pB - B), (0, 0))) if pB != B else phi
    phi_t = phi_p.T                           # (D_in, pB)
    grid = (pB // tile_b,)

    flat_wb = []
    wb_specs = []
    for w, b in params:
        flat_wb += [w, b]
        # Same block every grid step -> weights/biases stay resident in VMEM.
        wb_specs += [pl.BlockSpec(w.shape, lambda i: (0, 0)),
                     pl.BlockSpec(b.shape, lambda i: (0, 0))]

    in_specs = [pl.BlockSpec((d_in, tile_b), lambda i: (0, i))] + wb_specs
    out_spec = pl.BlockSpec((1, tile_b), lambda i: (0, i))

    # Explicit VMEM budget: resident params + double-buffered I/O tiles + activation headroom.
    param_bytes = sum(int(a.size) * a.dtype.itemsize for a in flat_wb)
    max_h = max([w.shape[0] for w, _ in params[:-1]] + [d_in])
    io_bytes = 2 * tile_b * (d_in + 1) * 4
    act_bytes = 4 * tile_b * max_h * 4
    vmem_limit = int(min(max(param_bytes + io_bytes + act_bytes + (4 << 20), 8 << 20), 64 << 20))

    dims = [d_in] + [w.shape[0] for w, _ in params]
    flops = 2 * pB * sum(a * b for a, b in zip(dims[:-1], dims[1:]))
    bytes_accessed = int(phi_t.size) * 4 + param_bytes + pB * 4

    out = pl.pallas_call(
        _make_mlp_critic_kernel(num_layers),
        out_shape=jax.ShapeDtypeStruct((1, pB), jnp.float32),
        grid=grid,
        in_specs=in_specs,
        out_specs=out_spec,
        compiler_params=pltpu.CompilerParams(
            dimension_semantics=("parallel",),
            vmem_limit_bytes=vmem_limit),
        cost_estimate=pl.CostEstimate(
            flops=int(flops), transcendentals=0,
            bytes_accessed=int(bytes_accessed)),
    )(phi_t, *flat_wb)

    return out[0, :B]                         # .squeeze(-1) + drop batch padding


def init_params(key, layer_dims, last_w_scale=0.001):
    """Mirror MLPCritic's layer_init: orthogonal weights (gain sqrt(2) for ReLU
    hidden layers, gain 1 * last_w_scale for the Linear output layer), zero biases.
    Weights kept in PyTorch layout (out_features, in_features); biases (out, 1)."""
    assert layer_dims[-1] == 1
    n = len(layer_dims) - 1
    keys = jax.random.split(key, n)
    relu_gain = float(jnp.sqrt(2.0))          # nn.init.calculate_gain('relu')
    params = []
    for i in range(n):
        fan_in, fan_out = layer_dims[i], layer_dims[i + 1]
        last = (i == n - 1)
        scale = last_w_scale if last else relu_gain
        w = jax.nn.initializers.orthogonal(scale)(keys[i], (fan_out, fan_in), jnp.float32)
        b = jnp.zeros((fan_out, 1), jnp.float32)
        params.append((w, b))
    return params


def reference_forward(phi, params):
    """Plain-JAX reference mirroring MLPCritic.forward (x @ W^T + b per nn.Linear)."""
    h = phi
    for w, b in params[:-1]:
        h = jnp.maximum(
            jnp.dot(h, w.T, precision=jax.lax.Precision.HIGHEST) + b[:, 0], 0.0)
    w_last, b_last = params[-1]
    v = jnp.dot(h, w_last.T, precision=jax.lax.Precision.HIGHEST) + b_last[:, 0]
    return v[:, 0]


if __name__ == "__main__":
    # Small but lane-/MXU-friendly shapes: hidden dims are multiples of 128,
    # and B=200 exercises the padded last tile (two 128-wide grid steps).
    B = 200
    layer_dims = [64, 128, 128, 1]            # MLPCritic(layer_dims=[64, 128, 128, 1])

    key = jax.random.PRNGKey(0)
    k_phi, k_params = jax.random.split(key)
    phi = jax.random.normal(k_phi, (B, layer_dims[0]), jnp.float32)
    params = init_params(k_params, layer_dims, last_w_scale=0.001)

    value = mlp_critic_forward(phi, params, tile_b=128)
    value = jax.block_until_ready(value)

    ref = reference_forward(phi, params)
    assert value.shape == (B,)
    err = float(jnp.max(jnp.abs(value - ref)))
    scale = float(jnp.max(jnp.abs(ref))) + 1e-6
    assert err <= 1e-4 + 1e-3 * scale, (err, scale)

    print("KERNEL_OK")
</pallas_src>

<mosaic_0001>
module attributes {stable_mosaic.version = 11 : i64} {
  func.func @kernel(%arg0: i32, %arg1: memref<64x128xf32, #tpu.memory_space<vmem>>, %arg2: memref<128x64xf32, #tpu.memory_space<vmem>>, %arg3: memref<128x1xf32, #tpu.memory_space<vmem>>, %arg4: memref<128x128xf32, #tpu.memory_space<vmem>>, %arg5: memref<128x1xf32, #tpu.memory_space<vmem>>, %arg6: memref<1x128xf32, #tpu.memory_space<vmem>>, %arg7: memref<1x1xf32, #tpu.memory_space<vmem>>, %arg8: memref<1x128xf32, #tpu.memory_space<vmem>>) attributes {dimension_semantics = [#tpu.dimension_semantics<parallel>], iteration_bounds = array<i64: 2>, scalar_prefetch = 0 : i64, scratch_operands = 0 : i64, tpu.core_type = #tpu.core_type<tc>, window_params = [{transform_indices = @transform_0, window_bounds = array<i64: 64, 128>}, {pipeline_mode = #tpu.pipeline_mode<synchronous>, transform_indices = @transform_1, window_bounds = array<i64: 128, 64>}, {pipeline_mode = #tpu.pipeline_mode<synchronous>, transform_indices = @transform_2, window_bounds = array<i64: 128, 1>}, {pipeline_mode = #tpu.pipeline_mode<synchronous>, transform_indices = @transform_3, window_bounds = array<i64: 128, 128>}, {pipeline_mode = #tpu.pipeline_mode<synchronous>, transform_indices = @transform_4, window_bounds = array<i64: 128, 1>}, {pipeline_mode = #tpu.pipeline_mode<synchronous>, transform_indices = @transform_5, window_bounds = array<i64: 1, 128>}, {pipeline_mode = #tpu.pipeline_mode<synchronous>, transform_indices = @transform_6, window_bounds = array<i64: 1, 1>}, {transform_indices = @transform_7, window_bounds = array<i64: 1, 128>}]} {
    %c0 = arith.constant 0 : index
    %c0_0 = arith.constant 0 : index
    %0 = vector.load %arg1[%c0, %c0_0] : memref<64x128xf32, #tpu.memory_space<vmem>>, vector<64x128xf32>
    %c0_1 = arith.constant 0 : index
    %c0_2 = arith.constant 0 : index
    %1 = vector.load %arg2[%c0_1, %c0_2] : memref<128x64xf32, #tpu.memory_space<vmem>>, vector<128x64xf32>
    %c0_3 = arith.constant 0 : index
    %c0_4 = arith.constant 0 : index
    %2 = vector.load %arg3[%c0_3, %c0_4] : memref<128x1xf32, #tpu.memory_space<vmem>>, vector<128x1xf32>
    %cst = arith.constant dense<0.000000e+00> : vector<128x128xf32>
    %3 = tpu.matmul %1, %0, %cst {dimension_numbers = #tpu.dot_dimension_numbers<[1], [0], [0], [1], [0, 0, 1, 1], [], []>} : vector<128x64xf32>, vector<64x128xf32>, vector<128x128xf32> -> vector<128x128xf32>
    %4 = vector.broadcast %2 : vector<128x1xf32> to vector<128x128xf32>
    %5 = arith.addf %3, %4 : vector<128x128xf32>
    %cst_5 = arith.constant 0.000000e+00 : f32
    %6 = vector.broadcast %cst_5 : f32 to vector<128x128xf32>
    %7 = arith.maximumf %5, %6 : vector<128x128xf32>
    %c0_6 = arith.constant 0 : index
    %c0_7 = arith.constant 0 : index
    %8 = vector.load %arg4[%c0_6, %c0_7] : memref<128x128xf32, #tpu.memory_space<vmem>>, vector<128x128xf32>
    %c0_8 = arith.constant 0 : index
    %c0_9 = arith.constant 0 : index
    %9 = vector.load %arg5[%c0_8, %c0_9] : memref<128x1xf32, #tpu.memory_space<vmem>>, vector<128x1xf32>
    %cst_10 = arith.constant dense<0.000000e+00> : vector<128x128xf32>
    %10 = tpu.matmul %8, %7, %cst_10 {dimension_numbers = #tpu.dot_dimension_numbers<[1], [0], [0], [1], [0, 0, 1, 1], [], []>} : vector<128x128xf32>, vector<128x128xf32>, vector<128x128xf32> -> vector<128x128xf32>
    %11 = vector.broadcast %9 : vector<128x1xf32> to vector<128x128xf32>
    %12 = arith.addf %10, %11 : vector<128x128xf32>
    %cst_11 = arith.constant 0.000000e+00 : f32
    %13 = vector.broadcast %cst_11 : f32 to vector<128x128xf32>
    %14 = arith.maximumf %12, %13 : vector<128x128xf32>
    %c0_12 = arith.constant 0 : index
    %c0_13 = arith.constant 0 : index
    %15 = vector.load %arg6[%c0_12, %c0_13] : memref<1x128xf32, #tpu.memory_space<vmem>>, vector<1x128xf32>
    %c0_14 = arith.constant 0 : index
    %c0_15 = arith.constant 0 : index
    %16 = vector.load %arg7[%c0_14, %c0_15] : memref<1x1xf32, #tpu.memory_space<vmem>>, vector<1x1xf32>
    %cst_16 = arith.constant dense<0.000000e+00> : vector<1x128xf32>
    %17 = tpu.matmul %15, %14, %cst_16 {dimension_numbers = #tpu.dot_dimension_numbers<[1], [0], [0], [1], [0, 0, 1, 1], [], []>} : vector<1x128xf32>, vector<128x128xf32>, vector<1x128xf32> -> vector<1x128xf32>
    %18 = vector.broadcast %16 : vector<1x1xf32> to vector<1x128xf32>
    %19 = arith.addf %17, %18 : vector<1x128xf32>
    %c0_17 = arith.constant 0 : index
    %c0_18 = arith.constant 0 : index
    %20 = vector.load %arg8[%c0_17, %c0_18] : memref<1x128xf32, #tpu.memory_space<vmem>>, vector<1x128xf32>
    tpu.vector_store %arg8[%c0_17, %c0_18], %19 {strides = array<i32>} : memref<1x128xf32, #tpu.memory_space<vmem>>, vector<1x128xf32>,
    return
  }
  func.func @transform_0(%arg0: i32) -> (i32, i32) {
    %c0_i32 = arith.constant 0 : i32
    %c0_i32_0 = arith.constant 0 : i32
    return %c0_i32, %arg0 : i32, i32
  }
  func.func @transform_1(%arg0: i32) -> (i32, i32) {
    %c0_i32 = arith.constant 0 : i32
    %c0_i32_0 = arith.constant 0 : i32
    %c0_i32_1 = arith.constant 0 : i32
    return %c0_i32, %c0_i32_0 : i32, i32
  }
  func.func @transform_2(%arg0: i32) -> (i32, i32) {
    %c0_i32 = arith.constant 0 : i32
    %c0_i32_0 = arith.constant 0 : i32
    %c0_i32_1 = arith.constant 0 : i32
    return %c0_i32, %c0_i32_0 : i32, i32
  }
  func.func @transform_3(%arg0: i32) -> (i32, i32) {
    %c0_i32 = arith.constant 0 : i32
    %c0_i32_0 = arith.constant 0 : i32
    %c0_i32_1 = arith.constant 0 : i32
    return %c0_i32, %c0_i32_0 : i32, i32
  }
  func.func @transform_4(%arg0: i32) -> (i32, i32) {
    %c0_i32 = arith.constant 0 : i32
    %c0_i32_0 = arith.constant 0 : i32
    %c0_i32_1 = arith.constant 0 : i32
    return %c0_i32, %c0_i32_0 : i32, i32
  }
  func.func @transform_5(%arg0: i32) -> (i32, i32) {
    %c0_i32 = arith.constant 0 : i32
    %c0_i32_0 = arith.constant 0 : i32
    %c0_i32_1 = arith.constant 0 : i32
    return %c0_i32, %c0_i32_0 : i32, i32
  }
  func.func @transform_6(%arg0: i32) -> (i32, i32) {
    %c0_i32 = arith.constant 0 : i32
    %c0_i32_0 = arith.constant 0 : i32
    %c0_i32_1 = arith.constant 0 : i32
    return %c0_i32, %c0_i32_0 : i32, i32
  }
  func.func @transform_7(%arg0: i32) -> (i32, i32) {
    %c0_i32 = arith.constant 0 : i32
    %c0_i32_0 = arith.constant 0 : i32
    return %c0_i32, %arg0 : i32, i32
  }
}

</mosaic_0001>

<llo_original>
// kernel: tpu_custom_call.1
$region0: #{tpu_custom_call.1}
  #allocation0 [shape = 'u32[]', space=smem, size = 0x4, offset = 0x4, fixed_abs, tag = 'smem constant byte address 0x4 - core index']
  #allocation1 [shape = 'u32[144,128]{1,0:T(1,128)}', space=vmem, size = 0x12000, scoped, tag = 'internal scratch']
  #allocation2 [shape = 'f32[1,1]{1,0:T(1,128)S(1)}', space=vmem, size = 0x200, scoped, tag = 'scoped memory for tpu_custom_call.1']
  %s0 = inlined_call_operand.vmem [shape: f32[64,256], index: 0, kind: input, shape index: {}]
  %s1 = inlined_call_operand.vmem [shape: f32[128,64], index: 1, kind: input, shape index: {}]
  %s2 = inlined_call_operand.vmem [shape: f32[128,1], index: 2, kind: input, shape index: {}]
  %s3 = inlined_call_operand.vmem [shape: f32[128,128], index: 3, kind: input, shape index: {}]
  %s4 = inlined_call_operand.vmem [shape: f32[128,1], index: 4, kind: input, shape index: {}]
  %s5 = inlined_call_operand.vmem [shape: f32[1,128], index: 5, kind: input, shape index: {}]
  %s6 = inlined_call_operand.<no memory space> [shape: f32[1,1], index: 6, kind: input, shape index: {}]
  %s7 = inlined_call_operand.hbm [shape: f32[1,256], index: 7, kind: output, shape index: {}]
  %s8 = sld [smem:[#allocation0]]
  $region99: #{tpu_custom_call.1} parent=0
    _
  %s10 = ssub.s32 1, %s8
  %s11 = scalar_select 0, %s10, %s8
  %v12 = vstv %s6
  %13 = vst [vmem:[#allocation2] sm:$0x1] %v12
  $region1: #{tpu_custom_call.1} parent=0
    #allocation3 [shape = 'u8[65536]{0}', space=vmem, size = 0x10000, scoped, tag = 'input window, operand 0']
    #allocation4 [shape = 'u8[1024]{0}', space=vmem, size = 0x400, scoped, tag = 'output window, operand 0']
    #allocation5 [shape = 's32[2]{0}', space=sflag, size = 0x8, scoped, tag = 'scoped memory for tpu_custom_call.1']
    %14 = vsyncpa [#allocation5], 0
    %s15 = scalar_lea.sflag [#allocation5], 1
    %16 = vsyncpa %s15, 0
    loop: start=0, step=1, limit=4
    $region2: #{tpu_custom_call.1} parent=1 // loop_pre_header
      _
    $region3: #{tpu_custom_call.1} parent=1 // loop_header
      %s18 = sphi 0, %s22
      %p19 = scmp.ge.s32.totalorder %s18, 4
      %s28 = sphi 0, %s30
      %s31 = sphi 0, %s28
      %s32 = sphi 0, %s31
      %s48 = sphi 0, %s32
      %s52 = sphi 0, %s52
      %s54 = sphi 0, %s52
      %s55 = sphi 0, %s54
      %s69 = sphi 0, %s55
      %s73 = sphi 0, %s73
      %s75 = sphi 0, %s73
      %s76 = sphi 0, %s75
      %s90 = sphi 0, %s76
      %s94 = sphi 0, %s94
      %s96 = sphi 0, %s94
      %s97 = sphi 0, %s96
      %s111 = sphi 0, %s97
      %s115 = sphi 0, %s115
      %s117 = sphi 0, %s115
      %s118 = sphi 0, %s117
      %s132 = sphi 0, %s118
      %s136 = sphi 0, %s136
      %s138 = sphi 0, %s136
      %s139 = sphi 0, %s138
      %s153 = sphi 0, %s139
      %s157 = sphi 0, %s157
      %s159 = sphi 0, %s157
      %s160 = sphi 0, %s159
      %s174 = sphi 0, %s160
      %s180 = sphi 0, %s182
      %s183 = sphi 0, %s180
      %s184 = sphi 0, %s183
      %s200 = sphi 0, %s184
    $region4: #{tpu_custom_call.1} parent=1 // loop_header_branch
      %21 = sbr.rel (%p19) target = $region8
    $region5: #{tpu_custom_call.1} parent=1 // loop_body
      %s23 = ssub.s32 %s18, 1
      %s24 = ssub.s32 %s18, 2
      %s25 = sadd.s32 %s18, 1
      %s26 = ssub.s32 %s18, %s25
      %p27 = scmp.eq.s32.totalorder %s26, 0
      %s29 = sadd.s32 %s28, 1
      %s30 = scalar_select %p27, %s28, %s29
      %p33 = pneg %p27
      %p34 = scmp.eq.s32.totalorder %s18, 1
      %p35 = por %p33, %p34
      %p36 = scmp.ne.s32.totalorder %s28, %s31
      %p37 = scmp.eq.s32.totalorder %s18, 0
      %p38 = por %p36, %p37
      %p39 = scmp.ne.s32.totalorder %s28, %s31
      %p40 = scmp.eq.s32.totalorder %s23, 1
      %p41 = por %p39, %p40
      %p42 = scmp.ne.s32.totalorder %s31, %s32
      %p43 = scmp.eq.s32.totalorder %s23, 0
      %p44 = por %p42, %p43
      %p45 = scmp.ne.s32.totalorder %s31, %s32
      %p46 = scmp.eq.s32.totalorder %s24, 1
      %p47 = por %p45, %p46
      %p49 = scmp.ne.s32.totalorder %s32, %s48
      %p50 = scmp.eq.s32.totalorder %s24, 0
      %p51 = por %p49, %p50
      %s53 = sadd.s32 %s52, 1
      %p56 = scmp.eq.s32.totalorder %s18, 1
      %p57 = scmp.ne.s32.totalorder %s52, %s54
      %p58 = scmp.eq.s32.totalorder %s18, 0
      %p59 = por %p57, %p58
      %p60 = scmp.ne.s32.totalorder %s52, %s54
      %p61 = scmp.eq.s32.totalorder %s23, 1
      %p62 = por %p60, %p61
      %p63 = scmp.ne.s32.totalorder %s54, %s55
      %p64 = scmp.eq.s32.totalorder %s23, 0
      %p65 = por %p63, %p64
      %p66 = scmp.ne.s32.totalorder %s54, %s55
      %p67 = scmp.eq.s32.totalorder %s24, 1
      %p68 = por %p66, %p67
      %p70 = scmp.ne.s32.totalorder %s55, %s69
      %p71 = scmp.eq.s32.totalorder %s24, 0
      %p72 = por %p70, %p71
      %s74 = sadd.s32 %s73, 1
      %p77 = scmp.eq.s32.totalorder %s18, 1
      %p78 = scmp.ne.s32.totalorder %s73, %s75
      %p79 = scmp.eq.s32.totalorder %s18, 0
      %p80 = por %p78, %p79
      %p81 = scmp.ne.s32.totalorder %s73, %s75
      %p82 = scmp.eq.s32.totalorder %s23, 1
      %p83 = por %p81, %p82
      %p84 = scmp.ne.s32.totalorder %s75, %s76
      %p85 = scmp.eq.s32.totalorder %s23, 0
      %p86 = por %p84, %p85
      %p87 = scmp.ne.s32.totalorder %s75, %s76
      %p88 = scmp.eq.s32.totalorder %s24, 1
      %p89 = por %p87, %p88
      %p91 = scmp.ne.s32.totalorder %s76, %s90
      %p92 = scmp.eq.s32.totalorder %s24, 0
      %p93 = por %p91, %p92
      %s95 = sadd.s32 %s94, 1
      %p98 = scmp.eq.s32.totalorder %s18, 1
      %p99 = scmp.ne.s32.totalorder %s94, %s96
      %p100 = scmp.eq.s32.totalorder %s18, 0
      %p101 = por %p99, %p100
      %p102 = scmp.ne.s32.totalorder %s94, %s96
      %p103 = scmp.eq.s32.totalorder %s23, 1
      %p104 = por %p102, %p103
      %p105 = scmp.ne.s32.totalorder %s96, %s97
      %p106 = scmp.eq.s32.totalorder %s23, 0
      %p107 = por %p105, %p106
      %p108 = scmp.ne.s32.totalorder %s96, %s97
      %p109 = scmp.eq.s32.totalorder %s24, 1
      %p110 = por %p108, %p109
      %p112 = scmp.ne.s32.totalorder %s97, %s111
      %p113 = scmp.eq.s32.totalorder %s24, 0
      %p114 = por %p112, %p113
      %s116 = sadd.s32 %s115, 1
      %p119 = scmp.eq.s32.totalorder %s18, 1
      %p120 = scmp.ne.s32.totalorder %s115, %s117
      %p121 = scmp.eq.s32.totalorder %s18, 0
      %p122 = por %p120, %p121
      %p123 = scmp.ne.s32.totalorder %s115, %s117
      %p124 = scmp.eq.s32.totalorder %s23, 1
      %p125 = por %p123, %p124
      %p126 = scmp.ne.s32.totalorder %s117, %s118
      %p127 = scmp.eq.s32.totalorder %s23, 0
      %p128 = por %p126, %p127
      %p129 = scmp.ne.s32.totalorder %s117, %s118
      %p130 = scmp.eq.s32.totalorder %s24, 1
      %p131 = por %p129, %p130
      %p133 = scmp.ne.s32.totalorder %s118, %s132
      %p134 = scmp.eq.s32.totalorder %s24, 0
      %p135 = por %p133, %p134
      %s137 = sadd.s32 %s136, 1
      %p140 = scmp.eq.s32.totalorder %s18, 1
      %p141 = scmp.ne.s32.totalorder %s136, %s138
      %p142 = scmp.eq.s32.totalorder %s18, 0
      %p143 = por %p141, %p142
      %p144 = scmp.ne.s32.totalorder %s136, %s138
      %p145 = scmp.eq.s32.totalorder %s23, 1
      %p146 = por %p144, %p145
      %p147 = scmp.ne.s32.totalorder %s138, %s139
      %p148 = scmp.eq.s32.totalorder %s23, 0
      %p149 = por %p147, %p148
      %p150 = scmp.ne.s32.totalorder %s138, %s139
      %p151 = scmp.eq.s32.totalorder %s24, 1
      %p152 = por %p150, %p151
      %p154 = scmp.ne.s32.totalorder %s139, %s153
      %p155 = scmp.eq.s32.totalorder %s24, 0
      %p156 = por %p154, %p155
      %s158 = sadd.s32 %s157, 1
      %p161 = scmp.eq.s32.totalorder %s18, 1
      %p162 = scmp.ne.s32.totalorder %s157, %s159
      %p163 = scmp.eq.s32.totalorder %s18, 0
      %p164 = por %p162, %p163
      %p165 = scmp.ne.s32.totalorder %s157, %s159
      %p166 = scmp.eq.s32.totalorder %s23, 1
      %p167 = por %p165, %p166
      %p168 = scmp.ne.s32.totalorder %s159, %s160
      %p169 = scmp.eq.s32.totalorder %s23, 0
      %p170 = por %p168, %p169
      %p171 = scmp.ne.s32.totalorder %s159, %s160
      %p172 = scmp.eq.s32.totalorder %s24, 1
      %p173 = por %p171, %p172
      %p175 = scmp.ne.s32.totalorder %s160, %s174
      %p176 = scmp.eq.s32.totalorder %s24, 0
      %p177 = por %p175, %p176
      %s178 = ssub.s32 %s18, %s25
      %p179 = scmp.eq.s32.totalorder %s178, 0
      %s181 = sadd.s32 %s180, 1
      %s182 = scalar_select %p179, %s180, %s181
      %p185 = pneg %p179
      %p186 = scmp.eq.s32.totalorder %s18, 1
      %p187 = por %p185, %p186
      %p188 = scmp.ne.s32.totalorder %s180, %s183
      %p189 = scmp.eq.s32.totalorder %s18, 0
      %p190 = por %p188, %p189
      %p191 = scmp.ne.s32.totalorder %s180, %s183
      %p192 = scmp.eq.s32.totalorder %s23, 1
      %p193 = por %p191, %p192
      %p194 = scmp.ne.s32.totalorder %s183, %s184
      %p195 = scmp.eq.s32.totalorder %s23, 0
      %p196 = por %p194, %p195
      %p197 = scmp.ne.s32.totalorder %s183, %s184
      %p198 = scmp.eq.s32.totalorder %s24, 1
      %p199 = por %p197, %p198
      %p201 = scmp.ne.s32.totalorder %s184, %s200
      %p202 = scmp.eq.s32.totalorder %s24, 0
      %p203 = por %p201, %p202
      %p204 = scmp.le.s32.totalorder 1, %s18
      %p205 = scmp.lt.s32.totalorder %s18, 3
      %p206 = pnand %p204, %p205
      %p207 = pneg %p206
      // Predicated region
      $region9: #{tpu_custom_call.1} parent=5 // pred_check
        _
      $region10: #{tpu_custom_call.1} parent=5 // pred_check_branch
        %209 = sbr.rel (%p206) target = $region12
      $region11: #{tpu_custom_call.1} parent=5 // pred_region
        %s210 = ssub.s32 %s18, 1
        // Predicated region
        $region13: #{tpu_custom_call.1} parent=11 // pred_check
          %p211 = pneg %p65
        $region14: #{tpu_custom_call.1} parent=11 // pred_check_branch
          %213 = sbr.rel (%p211) target = $region16
        $region15: #{tpu_custom_call.1} parent=11 // pred_region
          _
        $region16: #{tpu_custom_call.1} parent=11 // pred_fallthru
          _
        // Predicated region
        $region17: #{tpu_custom_call.1} parent=11 // pred_check
          %p214 = pneg %p86
        $region18: #{tpu_custom_call.1} parent=11 // pred_check_branch
          %216 = sbr.rel (%p214) target = $region20
        $region19: #{tpu_custom_call.1} parent=11 // pred_region
          _
        $region20: #{tpu_custom_call.1} parent=11 // pred_fallthru
          _
        // Predicated region
        $region21: #{tpu_custom_call.1} parent=11 // pred_check
          %p217 = pneg %p107
        $region22: #{tpu_custom_call.1} parent=11 // pred_check_branch
          %219 = sbr.rel (%p217) target = $region24
        $region23: #{tpu_custom_call.1} parent=11 // pred_region
          _
        $region24: #{tpu_custom_call.1} parent=11 // pred_fallthru
          _
        // Predicated region
        $region25: #{tpu_custom_call.1} parent=11 // pred_check
          %p220 = pneg %p128
        $region26: #{tpu_custom_call.1} parent=11 // pred_check_branch
          %222 = sbr.rel (%p220) target = $region28
        $region27: #{tpu_custom_call.1} parent=11 // pred_region
          _
        $region28: #{tpu_custom_call.1} parent=11 // pred_fallthru
          _
        // Predicated region
        $region29: #{tpu_custom_call.1} parent=11 // pred_check
          %p223 = pneg %p149
        $region30: #{tpu_custom_call.1} parent=11 // pred_check_branch
          %225 = sbr.rel (%p223) target = $region32
        $region31: #{tpu_custom_call.1} parent=11 // pred_region
          _
        $region32: #{tpu_custom_call.1} parent=11 // pred_fallthru
          _
        // Predicated region
        $region33: #{tpu_custom_call.1} parent=11 // pred_check
          %p226 = pneg %p170
        $region34: #{tpu_custom_call.1} parent=11 // pred_check_branch
          %228 = sbr.rel (%p226) target = $region36
        $region35: #{tpu_custom_call.1} parent=11 // pred_region
          _
        $region36: #{tpu_custom_call.1} parent=11 // pred_fallthru
          _
      $region12: #{tpu_custom_call.1} parent=5 // pred_fallthru
        _
      %p229 = scmp.lt.s32.totalorder %s18, 2
      // Predicated region
      $region37: #{tpu_custom_call.1} parent=5 // pred_check
        %p230 = pneg %p229
      $region38: #{tpu_custom_call.1} parent=5 // pred_check_branch
        %232 = sbr.rel (%p230) target = $region40
      $region39: #{tpu_custom_call.1} parent=5 // pred_region
        // Predicated region
        $region41: #{tpu_custom_call.1} parent=39 // pred_check
          %p233 = pneg %p38
        $region42: #{tpu_custom_call.1} parent=39 // pred_check_branch
          %235 = sbr.rel (%p233) target = $region44
        $region43: #{tpu_custom_call.1} parent=39 // pred_region
          %s236 = sand.u32 %s28, 1
          %s237 = sand.u32 %s28, 1
          %s238 = smul.addr %s237, 64
          %s239 = scalar_lea.vmem [#allocation3], %s238
          %s240 = smul.addr %s18, 8
          %s241 = scalar_lea.vmem %s0, %s240
          // Predicated region
          $region45: #{tpu_custom_call.1} parent=43 // pred_check
            _
          $region46: #{tpu_custom_call.1} parent=43 // pred_check_branch
            %243 = sbr.rel (0) target = $region48
          $region47: #{tpu_custom_call.1} parent=43 // pred_region
            // Predicated region
            $region49: #{tpu_custom_call.1} parent=47 // pred_check
              _
            $region50: #{tpu_custom_call.1} parent=47 // pred_check_branch
              %245 = sbr.rel (0) target = $region52
            $region51: #{tpu_custom_call.1} parent=47 // pred_region
              // Predicated region
              $region64: #{tpu_custom_call.1} parent=51 // pred_check
                _
              $region65: #{tpu_custom_call.1} parent=51 // pred_check_branch
                %274 = sbr.rel (0) target = $region67
              $region66: #{tpu_custom_call.1} parent=51 // pred_region
                loop: start=0, step=1, limit=1
                $region68: #{tpu_custom_call.1} parent=66 // loop_pre_header
                  _
                $region69: #{tpu_custom_call.1} parent=66 // loop_header
                  %s276 = sphi 0, %s280
                  %p277 = scmp.ge.s32.totalorder %s276, 1
                  %s281 = sphi %s241, %s241
                  %s282 = sphi %s239, %s239
                $region70: #{tpu_custom_call.1} parent=66 // loop_header_branch
                  %279 = sbr.rel (%p277) target = $region74
                $region71: #{tpu_custom_call.1} parent=66 // loop_body
                  %v283 = vld [vmem:[%s281] sm:$0xff]
                  %284 = vst [vmem:[%s282] sm:$0xff] %v283
                  %v285 = vld [vmem:[%s281 + $0x10] sm:$0xff]
                  %286 = vst [vmem:[%s282 + $0x8] sm:$0xff] %v285
                  %v287 = vld [vmem:[%s281 + $0x20] sm:$0xff]
                  %288 = vst [vmem:[%s282 + $0x10] sm:$0xff] %v287
                  %v289 = vld [vmem:[%s281 + $0x30] sm:$0xff]
                  %290 = vst [vmem:[%s282 + $0x18] sm:$0xff] %v289
                  %v291 = vld [vmem:[%s281 + $0x40] sm:$0xff]
                  %292 = vst [vmem:[%s282 + $0x20] sm:$0xff] %v291
                  %v293 = vld [vmem:[%s281 + $0x50] sm:$0xff]
                  %294 = vst [vmem:[%s282 + $0x28] sm:$0xff] %v293
                  %v295 = vld [vmem:[%s281 + $0x60] sm:$0xff]
                  %296 = vst [vmem:[%s282 + $0x30] sm:$0xff] %v295
                  %v297 = vld [vmem:[%s281 + $0x70] sm:$0xff]
                  %298 = vst [vmem:[%s282 + $0x38] sm:$0xff] %v297
                $region72: #{tpu_custom_call.1} parent=66 // loop_footer
                  %s280 = sadd.s32 1, %s276
                $region73: #{tpu_custom_call.1} parent=66 // loop_footer_branch
                  %275 = sbr.rel target = $region69
                $region74: #{tpu_custom_call.1} parent=66 // loop_exit
                  _
              $region67: #{tpu_custom_call.1} parent=51 // pred_fallthru
                _
              // Predicated region
              $region75: #{tpu_custom_call.1} parent=51 // pred_check
                _
              $region76: #{tpu_custom_call.1} parent=51 // pred_check_branch
                %300 = sbr.rel target = $region78
              $region77: #{tpu_custom_call.1} parent=51 // pred_region
                _
              $region78: #{tpu_custom_call.1} parent=51 // pred_fallthru
                _
            $region52: #{tpu_custom_call.1} parent=47 // pred_fallthru
              _
            // Predicated region
            $region53: #{tpu_custom_call.1} parent=47 // pred_check
              _
            $region54: #{tpu_custom_call.1} parent=47 // pred_check_branch
              %247 = sbr.rel target = $region56
            $region55: #{tpu_custom_call.1} parent=47 // pred_region
              loop: start=0, step=1, limit=1
              $region57: #{tpu_custom_call.1} parent=55 // loop_pre_header
                _
              $region58: #{tpu_custom_call.1} parent=55 // loop_header
                %s250 = sphi 0, %s254
                %p251 = scmp.ge.s32.totalorder %s250, 1
                %s255 = sphi %s241, %s241
                %s256 = sphi %s239, %s239
              $region59: #{tpu_custom_call.1} parent=55 // loop_header_branch
                %253 = sbr.rel (%p251) target = $region63
              $region60: #{tpu_custom_call.1} parent=55 // loop_body
                %v257 = vld [vmem:[%s255] sm:$0xff]
                %258 = vst [vmem:[%s256] sm:$0xff] %v257
                %v259 = vld [vmem:[%s255 + $0x10] sm:$0xff]
                %260 = vst [vmem:[%s256 + $0x8] sm:$0xff] %v259
                %v261 = vld [vmem:[%s255 + $0x20] sm:$0xff]
                %262 = vst [vmem:[%s256 + $0x10] sm:$0xff] %v261
                %v263 = vld [vmem:[%s255 + $0x30] sm:$0xff]
                %264 = vst [vmem:[%s256 + $0x18] sm:$0xff] %v263
                %v265 = vld [vmem:[%s255 + $0x40] sm:$0xff]
                %266 = vst [vmem:[%s256 + $0x20] sm:$0xff] %v265
                %v267 = vld [vmem:[%s255 + $0x50] sm:$0xff]
                %268 = vst [vmem:[%s256 + $0x28] sm:$0xff] %v267
                %v269 = vld [vmem:[%s255 + $0x60] sm:$0xff]
                %270 = vst [vmem:[%s256 + $0x30] sm:$0xff] %v269
                %v271 = vld [vmem:[%s255 + $0x70] sm:$0xff]
                %272 = vst [vmem:[%s256 + $0x38] sm:$0xff] %v271
              $region61: #{tpu_custom_call.1} parent=55 // loop_footer
                %s254 = sadd.s32 1, %s250
              $region62: #{tpu_custom_call.1} parent=55 // loop_footer_branch
                %249 = sbr.rel target = $region58
              $region63: #{tpu_custom_call.1} parent=55 // loop_exit
                _
            $region56: #{tpu_custom_call.1} parent=47 // pred_fallthru
              _
          $region48: #{tpu_custom_call.1} parent=43 // pred_fallthru
            _
          %301 = vnop
        $region44: #{tpu_custom_call.1} parent=39 // pred_fallthru
          _
      $region40: #{tpu_custom_call.1} parent=5 // pred_fallthru
        _
      %p302 = scmp.le.s32.totalorder 1, %s18
      %p303 = scmp.lt.s32.totalorder %s18, 3
      %p304 = pnand %p302, %p303
      %p305 = pneg %p304
      // Predicated region
      $region79: #{tpu_custom_call.1} parent=5 // pred_check
        _
      $region80: #{tpu_custom_call.1} parent=5 // pred_check_branch
        %307 = sbr.rel (%p304) target = $region82
      $region81: #{tpu_custom_call.1} parent=5 // pred_region
        %s308 = ssub.s32 %s18, 1
        %s309 = sand.u32 %s31, 1
        %s310 = sand.u32 %s31, 1
        %s311 = smul.addr %s310, 64
        %s312 = scalar_lea.vmem [#allocation3], %s311
        // Predicated region
        $region83: #{tpu_custom_call.1} parent=81 // pred_check
          %p313 = pneg %p44
        $region84: #{tpu_custom_call.1} parent=81 // pred_check_branch
          %315 = sbr.rel (%p313) target = $region86
        $region85: #{tpu_custom_call.1} parent=81 // pred_region
          _
        $region86: #{tpu_custom_call.1} parent=81 // pred_fallthru
          _
        %s316 = sand.u32 %s31, 1
        %s317 = sand.u32 %s31, 1
        %s318 = smul.addr %s317, 64
        %s319 = scalar_lea.vmem [#allocation3], %s318
        %p320 = pneg %p44
        %p321 = pneg %p41
        %p322 = pneg %p65
        %p323 = pneg %p62
        %p324 = pneg %p86
        %p325 = pneg %p83
        %p326 = pneg %p107
        %p327 = pneg %p104
        %p328 = pneg %p128
        %p329 = pneg %p125
        %p330 = pneg %p149
        %p331 = pneg %p146
        %p332 = pneg %p170
        %p333 = pneg %p167
        %p334 = pneg %p196
        %p335 = pneg %p193
        %s336 = sand.u32 %s183, 1
        %s337 = scalar_lea.sflag [#allocation5], %s336
        %s338 = sand.u32 %s183, 1
        %s339 = scalar_lea.vmem [#allocation4], %s338
        %v340 = vld [vmem:[%s312] sm:$0xff]
        %v341 = vld [vmem:[%s312 + $0x8] sm:$0xff]
        %v342 = vld [vmem:[%s312 + $0x10] sm:$0xff]
        %v343 = vld [vmem:[%s312 + $0x18] sm:$0xff]
        %v344 = vld [vmem:[%s312 + $0x20] sm:$0xff]
        %v345 = vld [vmem:[%s312 + $0x28] sm:$0xff]
        %v346 = vld [vmem:[%s312 + $0x30] sm:$0xff]
        %v347 = vld [vmem:[%s312 + $0x38] sm:$0xff]
        %v348 = vld [vmem:[%s1] sm:$0xff]
        %v349 = vld [vmem:[%s1 + $0x8] sm:$0xff]
        %v350 = vld [vmem:[%s1 + $0x10] sm:$0xff]
        %v351 = vld [vmem:[%s1 + $0x18] sm:$0xff]
        %v352 = vld [vmem:[%s1 + $0x20] sm:$0xff]
        %v353 = vld [vmem:[%s1 + $0x28] sm:$0xff]
        %v354 = vld [vmem:[%s1 + $0x30] sm:$0xff]
        %v355 = vld [vmem:[%s1 + $0x38] sm:$0xff]
        %v356 = vld [vmem:[%s1 + $0x40] sm:$0xff]
        %v357 = vld [vmem:[%s1 + $0x48] sm:$0xff]
        %v358 = vld [vmem:[%s1 + $0x50] sm:$0xff]
        %v359 = vld [vmem:[%s1 + $0x58] sm:$0xff]
        %v360 = vld [vmem:[%s1 + $0x60] sm:$0xff]
        %v361 = vld [vmem:[%s1 + $0x68] sm:$0xff]
        %v362 = vld [vmem:[%s1 + $0x70] sm:$0xff]
        %v363 = vld [vmem:[%s1 + $0x78] sm:$0xff]
        %v364 = vld [vmem:[%s2] sm:$0xff]
        %v365 = vld [vmem:[%s2 + $0x8] sm:$0xff]
        %v366 = vld [vmem:[%s2 + $0x10] sm:$0xff]
        %v367 = vld [vmem:[%s2 + $0x18] sm:$0xff]
        %v368 = vld [vmem:[%s2 + $0x20] sm:$0xff]
        %v369 = vld [vmem:[%s2 + $0x28] sm:$0xff]
        %v370 = vld [vmem:[%s2 + $0x30] sm:$0xff]
        %v371 = vld [vmem:[%s2 + $0x38] sm:$0xff]
        %v372 = vld [vmem:[%s2 + $0x40] sm:$0xff]
        %v373 = vld [vmem:[%s2 + $0x48] sm:$0xff]
        %v374 = vld [vmem:[%s2 + $0x50] sm:$0xff]
        %v375 = vld [vmem:[%s2 + $0x58] sm:$0xff]
        %v376 = vld [vmem:[%s2 + $0x60] sm:$0xff]
        %v377 = vld [vmem:[%s2 + $0x68] sm:$0xff]
        %v378 = vld [vmem:[%s2 + $0x70] sm:$0xff]
        %v379 = vld [vmem:[%s2 + $0x78] sm:$0xff]
        %381 = vset.pattern.permute.xlu0 0
        %382 = vperm.xlu0 %381, %v364
        %v383 = vpop.permute.xlu0 %382
        %386 = vset.pattern.permute.xlu0 0
        %387 = vperm.xlu0 %386, %v365
        %v388 = vpop.permute.xlu0 %387
        %391 = vset.pattern.permute.xlu0 0
        %392 = vperm.xlu0 %391, %v366
        %v393 = vpop.permute.xlu0 %392
        %396 = vset.pattern.permute.xlu0 0
        %397 = vperm.xlu0 %396, %v367
        %v398 = vpop.permute.xlu0 %397
        %401 = vset.pattern.permute.xlu0 0
        %402 = vperm.xlu0 %401, %v368
        %v403 = vpop.permute.xlu0 %402
        %406 = vset.pattern.permute.xlu0 0
        %407 = vperm.xlu0 %406, %v369
        %v408 = vpop.permute.xlu0 %407
        %411 = vset.pattern.permute.xlu0 0
        %412 = vperm.xlu0 %411, %v370
        %v413 = vpop.permute.xlu0 %412
        %416 = vset.pattern.permute.xlu0 0
        %417 = vperm.xlu0 %416, %v371
        %v418 = vpop.permute.xlu0 %417
        %421 = vset.pattern.permute.xlu0 0
        %422 = vperm.xlu0 %421, %v372
        %v423 = vpop.permute.xlu0 %422
        %426 = vset.pattern.permute.xlu0 0
        %427 = vperm.xlu0 %426, %v373
        %v428 = vpop.permute.xlu0 %427
        %431 = vset.pattern.permute.xlu0 0
        %432 = vperm.xlu0 %431, %v374
        %v433 = vpop.permute.xlu0 %432
        %436 = vset.pattern.permute.xlu0 0
        %437 = vperm.xlu0 %436, %v375
        %v438 = vpop.permute.xlu0 %437
        %441 = vset.pattern.permute.xlu0 0
        %442 = vperm.xlu0 %441, %v376
        %v443 = vpop.permute.xlu0 %442
        %446 = vset.pattern.permute.xlu0 0
        %447 = vperm.xlu0 %446, %v377
        %v448 = vpop.permute.xlu0 %447
        %451 = vset.pattern.permute.xlu0 0
        %452 = vperm.xlu0 %451, %v378
        %v453 = vpop.permute.xlu0 %452
        %456 = vset.pattern.permute.xlu0 0
        %457 = vperm.xlu0 %456, %v379
        %v458 = vpop.permute.xlu0 %457
        %vm460 = vcmask 523264
        %v462 = vsel %vm460, %v348, 0
        %v465 = vsel %vm460, %v349, 0
        %v468 = vsel %vm460, %v350, 0
        %v471 = vsel %vm460, %v351, 0
        %v474 = vsel %vm460, %v352, 0
        %v477 = vsel %vm460, %v353, 0
        %v480 = vsel %vm460, %v354, 0
        %v483 = vsel %vm460, %v355, 0
        %v486 = vsel %vm460, %v356, 0
        %v489 = vsel %vm460, %v357, 0
        %v492 = vsel %vm460, %v358, 0
        %v495 = vsel %vm460, %v359, 0
        %v498 = vsel %vm460, %v360, 0
        %v501 = vsel %vm460, %v361, 0
        %v504 = vsel %vm460, %v362, 0
        %v507 = vsel %vm460, %v363, 0
        %509 = vmatprep.subr.mxu0 0.0
        %510 = vmatpush1.msra.mxu0 %v340
        %511 = vmatprep.subr.mxu0 0.0
        %512 = vmatpush1.msra.mxu0 %v341
        %513 = vmatprep.subr.mxu0 0.0
        %514 = vmatpush1.msra.mxu0 %v342
        %515 = vmatprep.subr.mxu0 0.0
        %516 = vmatpush1.msra.mxu0 %v343
        %517 = vmatprep.subr.mxu0 0.0
        %518 = vmatpush1.msra.mxu0 %v344
        %519 = vmatprep.subr.mxu0 0.0
        %520 = vmatpush1.msra.mxu0 %v345
        %521 = vmatprep.subr.mxu0 0.0
        %522 = vmatpush1.msra.mxu0 %v346
        %523 = vmatprep.subr.mxu0 0.0
        %524 = vmatpush1.msra.mxu0 %v347
        %525 = vmatprep.subr.mxu0 0.0
        %526 = vmatpush1.msra.mxu0 0.0
        %527 = vmatprep.subr.mxu0 0.0
        %528 = vmatpush1.msra.mxu0 0.0
        %529 = vmatprep.subr.mxu0 0.0
        %530 = vmatpush1.msra.mxu0 0.0
        %531 = vmatprep.subr.mxu0 0.0
        %532 = vmatpush1.msra.mxu0 0.0
        %533 = vmatprep.subr.mxu0 0.0
        %534 = vmatpush1.msra.mxu0 0.0
        %535 = vmatprep.subr.mxu0 0.0
        %536 = vmatpush1.msra.mxu0 0.0
        %537 = vmatprep.subr.mxu0 0.0
        %538 = vmatpush1.msra.mxu0 0.0
        %539 = vmatprep.subr.mxu0 0.0
        %540 = vmatpush1.msra.mxu0 0.0
        %541 = vmatprep.subr.mxu0 0.0
        %542 = vmatpush1.msra.mxu0 0.0
        %543 = vmatprep.subr.mxu0 0.0
        %544 = vmatpush1.msra.mxu0 0.0
        %545 = vmatprep.subr.mxu0 0.0
        %546 = vmatpush1.msra.mxu0 0.0
        %547 = vmatprep.subr.mxu0 0.0
        %548 = vmatpush1.msra.mxu0 0.0
        %549 = vmatprep.subr.mxu0 0.0
        %550 = vmatpush1.msra.mxu0 0.0
        %551 = vmatprep.subr.mxu0 0.0
        %552 = vmatpush1.msra.mxu0 0.0
        %553 = vmatprep.subr.mxu0 0.0
        %554 = vmatpush1.msra.mxu0 0.0
        %555 = vmatprep.subr.mxu0 0.0
        %556 = vmatpush1.msra.mxu0 0.0
        %557 = vmatprep.subr.mxu0 0.0
        %558 = vmatpush1.msra.mxu0 0.0
        %559 = vmatprep.subr.mxu0 0.0
        %560 = vmatpush1.msra.mxu0 0.0
        %561 = vmatprep.subr.mxu0 0.0
        %562 = vmatpush1.msra.mxu0 0.0
        %563 = vmatprep.subr.mxu0 0.0
        %564 = vmatpush1.msra.mxu0 0.0
        %565 = vmatprep.subr.mxu0 0.0
        %566 = vmatpush1.msra.mxu0 0.0
        %567 = vmatprep.subr.mxu0 0.0
        %568 = vmatpush1.msra.mxu0 0.0
        %569 = vmatprep.subr.mxu0 0.0
        %570 = vmatpush1.msra.mxu0 0.0
        %571 = vmatprep.subr.mxu0 0.0
        %572 = vmatpush1.msra.mxu0 0.0
        %573 = vmatprep.mubr.f32.mxu0 0.0
        %574 = vmatmul.mubr.f32.gmra.mrb[0].mxu0 %v462
        %v575 = vpop.f32.mrb[0].mxu0
        %v576 = vadd.f32 %v383, %v575
        %v577 = vpop.f32.mrb[0].mxu0
        %578 = vmatprep.mubr.f32.mxu0 0.0
        %579 = vmatmul.mubr.f32.gmra.mrb[0].mxu0 %v465
        %v580 = vpop.f32.mrb[0].mxu0
        %v581 = vadd.f32 %v388, %v580
        %v582 = vpop.f32.mrb[0].mxu0
        %583 = vmatprep.mubr.f32.mxu0 0.0
        %584 = vmatmul.mubr.f32.gmra.mrb[0].mxu0 %v468
        %v585 = vpop.f32.mrb[0].mxu0
        %v586 = vadd.f32 %v393, %v585
        %v587 = vpop.f32.mrb[0].mxu0
        %588 = vmatprep.mubr.f32.mxu0 0.0
        %589 = vmatmul.mubr.f32.gmra.mrb[0].mxu0 %v471
        %v590 = vpop.f32.mrb[0].mxu0
        %v591 = vadd.f32 %v398, %v590
        %v592 = vpop.f32.mrb[0].mxu0
        %593 = vmatprep.mubr.f32.mxu0 0.0
        %594 = vmatmul.mubr.f32.gmra.mrb[0].mxu0 %v474
        %v595 = vpop.f32.mrb[0].mxu0
        %v596 = vadd.f32 %v403, %v595
        %v597 = vpop.f32.mrb[0].mxu0
        %598 = vmatprep.mubr.f32.mxu0 0.0
        %599 = vmatmul.mubr.f32.gmra.mrb[0].mxu0 %v477
        %v600 = vpop.f32.mrb[0].mxu0
        %v601 = vadd.f32 %v408, %v600
        %v602 = vpop.f32.mrb[0].mxu0
        %603 = vmatprep.mubr.f32.mxu0 0.0
        %604 = vmatmul.mubr.f32.gmra.mrb[0].mxu0 %v480
        %v605 = vpop.f32.mrb[0].mxu0
        %v606 = vadd.f32 %v413, %v605
        %v607 = vpop.f32.mrb[0].mxu0
        %608 = vmatprep.mubr.f32.mxu0 0.0
        %609 = vmatmul.mubr.f32.gmra.mrb[0].mxu0 %v483
        %v610 = vpop.f32.mrb[0].mxu0
        %v611 = vadd.f32 %v418, %v610
        %v612 = vpop.f32.mrb[0].mxu0
        %613 = vmatprep.mubr.f32.mxu0 0.0
        %614 = vmatmul.mubr.f32.gmra.mrb[0].mxu0 %v486
        %v615 = vpop.f32.mrb[0].mxu0
        %v616 = vadd.f32 %v423, %v615
        %v617 = vpop.f32.mrb[0].mxu0
        %618 = vmatprep.mubr.f32.mxu0 0.0
        %619 = vmatmul.mubr.f32.gmra.mrb[0].mxu0 %v489
        %v620 = vpop.f32.mrb[0].mxu0
        %v621 = vadd.f32 %v428, %v620
        %v622 = vpop.f32.mrb[0].mxu0
        %623 = vmatprep.mubr.f32.mxu0 0.0
        %624 = vmatmul.mubr.f32.gmra.mrb[0].mxu0 %v492
        %v625 = vpop.f32.mrb[0].mxu0
        %v626 = vadd.f32 %v433, %v625
        %v627 = vpop.f32.mrb[0].mxu0
        %628 = vmatprep.mubr.f32.mxu0 0.0
        %629 = vmatmul.mubr.f32.gmra.mrb[0].mxu0 %v495
        %v630 = vpop.f32.mrb[0].mxu0
        %v631 = vadd.f32 %v438, %v630
        %v632 = vpop.f32.mrb[0].mxu0
        %633 = vmatprep.mubr.f32.mxu0 0.0
        %634 = vmatmul.mubr.f32.gmra.mrb[0].mxu0 %v498
        %v635 = vpop.f32.mrb[0].mxu0
        %v636 = vadd.f32 %v443, %v635
        %v637 = vpop.f32.mrb[0].mxu0
        %638 = vmatprep.mubr.f32.mxu0 0.0
        %639 = vmatmul.mubr.f32.gmra.mrb[0].mxu0 %v501
        %v640 = vpop.f32.mrb[0].mxu0
        %v641 = vadd.f32 %v448, %v640
        %v642 = vpop.f32.mrb[0].mxu0
        %643 = vmatprep.mubr.f32.mxu0 0.0
        %644 = vmatmul.mubr.f32.gmra.mrb[0].mxu0 %v504
        %v645 = vpop.f32.mrb[0].mxu0
        %v646 = vadd.f32 %v453, %v645
        %v647 = vpop.f32.mrb[0].mxu0
        %648 = vmatprep.mubr.f32.mxu0 0.0
        %649 = vmatmul.mubr.f32.gmra.mrb[0].mxu0 %v507
        %v650 = vpop.f32.mrb[0].mxu0
        %v651 = vadd.f32 %v458, %v650
        %v652 = vpop.f32.mrb[0].mxu0
        %653 = vdwg.mxu0
        %v654 = vmax.f32 %v576, 0.0
        %v655 = vmax.f32 %v581, 0.0
        %v656 = vmax.f32 %v586, 0.0
        %v657 = vmax.f32 %v591, 0.0
        %v658 = vmax.f32 %v596, 0.0
        %v659 = vmax.f32 %v601, 0.0
        %v660 = vmax.f32 %v606, 0.0
        %v661 = vmax.f32 %v611, 0.0
        %v662 = vmax.f32 %v616, 0.0
        %v663 = vmax.f32 %v621, 0.0
        %v664 = vmax.f32 %v626, 0.0
        %v665 = vmax.f32 %v631, 0.0
        %v666 = vmax.f32 %v636, 0.0
        %v667 = vmax.f32 %v641, 0.0
        %v668 = vmax.f32 %v646, 0.0
        %v669 = vmax.f32 %v651, 0.0
        %v670 = vld [vmem:[%s3] sm:$0xff]
        %v671 = vld [vmem:[%s3 + $0x8] sm:$0xff]
        %v672 = vld [vmem:[%s3 + $0x10] sm:$0xff]
        %v673 = vld [vmem:[%s3 + $0x18] sm:$0xff]
        %v674 = vld [vmem:[%s3 + $0x20] sm:$0xff]
        %v675 = vld [vmem:[%s3 + $0x28] sm:$0xff]
        %v676 = vld [vmem:[%s3 + $0x30] sm:$0xff]
        %v677 = vld [vmem:[%s3 + $0x38] sm:$0xff]
        %v678 = vld [vmem:[%s3 + $0x40] sm:$0xff]
        %v679 = vld [vmem:[%s3 + $0x48] sm:$0xff]
        %v680 = vld [vmem:[%s3 + $0x50] sm:$0xff]
        %v681 = vld [vmem:[%s3 + $0x58] sm:$0xff]
        %v682 = vld [vmem:[%s3 + $0x60] sm:$0xff]
        %v683 = vld [vmem:[%s3 + $0x68] sm:$0xff]
        %v684 = vld [vmem:[%s3 + $0x70] sm:$0xff]
        %v685 = vld [vmem:[%s3 + $0x78] sm:$0xff]
        %v686 = vld [vmem:[%s4] sm:$0xff]
        %v687 = vld [vmem:[%s4 + $0x8] sm:$0xff]
        %v688 = vld [vmem:[%s4 + $0x10] sm:$0xff]
        %v689 = vld [vmem:[%s4 + $0x18] sm:$0xff]
        %v690 = vld [vmem:[%s4 + $0x20] sm:$0xff]
        %v691 = vld [vmem:[%s4 + $0x28] sm:$0xff]
        %v692 = vld [vmem:[%s4 + $0x30] sm:$0xff]
        %v693 = vld [vmem:[%s4 + $0x38] sm:$0xff]
        %v694 = vld [vmem:[%s4 + $0x40] sm:$0xff]
        %v695 = vld [vmem:[%s4 + $0x48] sm:$0xff]
        %v696 = vld [vmem:[%s4 + $0x50] sm:$0xff]
        %v697 = vld [vmem:[%s4 + $0x58] sm:$0xff]
        %v698 = vld [vmem:[%s4 + $0x60] sm:$0xff]
        %v699 = vld [vmem:[%s4 + $0x68] sm:$0xff]
        %v700 = vld [vmem:[%s4 + $0x70] sm:$0xff]
        %v701 = vld [vmem:[%s4 + $0x78] sm:$0xff]
        %703 = vset.pattern.permute.xlu0 0
        %704 = vperm.xlu0 %703, %v686
        %v705 = vpop.permute.xlu0 %704
        %708 = vset.pattern.permute.xlu0 0
        %709 = vperm.xlu0 %708, %v687
        %v710 = vpop.permute.xlu0 %709
        %713 = vset.pattern.permute.xlu0 0
        %714 = vperm.xlu0 %713, %v688
        %v715 = vpop.permute.xlu0 %714
        %718 = vset.pattern.permute.xlu0 0
        %719 = vperm.xlu0 %718, %v689
        %v720 = vpop.permute.xlu0 %719
        %723 = vset.pattern.permute.xlu0 0
        %724 = vperm.xlu0 %723, %v690
        %v725 = vpop.permute.xlu0 %724
        %728 = vset.pattern.permute.xlu0 0
        %729 = vperm.xlu0 %728, %v691
        %v730 = vpop.permute.xlu0 %729
        %733 = vset.pattern.permute.xlu0 0
        %734 = vperm.xlu0 %733, %v692
        %v735 = vpop.permute.xlu0 %734
        %738 = vset.pattern.permute.xlu0 0
        %739 = vperm.xlu0 %738, %v693
        %v740 = vpop.permute.xlu0 %739
        %743 = vset.pattern.permute.xlu0 0
        %744 = vperm.xlu0 %743, %v694
        %v745 = vpop.permute.xlu0 %744
        %748 = vset.pattern.permute.xlu0 0
        %749 = vperm.xlu0 %748, %v695
        %v750 = vpop.permute.xlu0 %749
        %753 = vset.pattern.permute.xlu0 0
        %754 = vperm.xlu0 %753, %v696
        %v755 = vpop.permute.xlu0 %754
        %758 = vset.pattern.permute.xlu0 0
        %759 = vperm.xlu0 %758, %v697
        %v760 = vpop.permute.xlu0 %759
        %763 = vset.pattern.permute.xlu0 0
        %764 = vperm.xlu0 %763, %v698
        %v765 = vpop.permute.xlu0 %764
        %768 = vset.pattern.permute.xlu0 0
        %769 = vperm.xlu0 %768, %v699
        %v770 = vpop.permute.xlu0 %769
        %773 = vset.pattern.permute.xlu0 0
        %774 = vperm.xlu0 %773, %v700
        %v775 = vpop.permute.xlu0 %774
        %778 = vset.pattern.permute.xlu0 0
        %779 = vperm.xlu0 %778, %v701
        %v780 = vpop.permute.xlu0 %779
        %782 = vmatprep.subr.mxu0 0.0
        %783 = vmatpush1.msra.mxu0 %v654
        %784 = vmatprep.subr.mxu0 0.0
        %785 = vmatpush1.msra.mxu0 %v655
        %786 = vmatprep.subr.mxu0 0.0
        %787 = vmatpush1.msra.mxu0 %v656
        %788 = vmatprep.subr.mxu0 0.0
        %789 = vmatpush1.msra.mxu0 %v657
        %790 = vmatprep.subr.mxu0 0.0
        %791 = vmatpush1.msra.mxu0 %v658
        %792 = vmatprep.subr.mxu0 0.0
        %793 = vmatpush1.msra.mxu0 %v659
        %794 = vmatprep.subr.mxu0 0.0
        %795 = vmatpush1.msra.mxu0 %v660
        %796 = vmatprep.subr.mxu0 0.0
        %797 = vmatpush1.msra.mxu0 %v661
        %798 = vmatprep.subr.mxu0 0.0
        %799 = vmatpush1.msra.mxu0 %v662
        %800 = vmatprep.subr.mxu0 0.0
        %801 = vmatpush1.msra.mxu0 %v663
        %802 = vmatprep.subr.mxu0 0.0
        %803 = vmatpush1.msra.mxu0 %v664
        %804 = vmatprep.subr.mxu0 0.0
        %805 = vmatpush1.msra.mxu0 %v665
        %806 = vmatprep.subr.mxu0 0.0
        %807 = vmatpush1.msra.mxu0 %v666
        %808 = vmatprep.subr.mxu0 0.0
        %809 = vmatpush1.msra.mxu0 %v667
        %810 = vmatprep.subr.mxu0 0.0
        %811 = vmatpush1.msra.mxu0 %v668
        %812 = vmatprep.subr.mxu0 0.0
        %813 = vmatpush1.msra.mxu0 %v669
        %814 = vmatprep.subr.mxu0 0.0
        %815 = vmatpush1.msra.mxu0 0.0
        %816 = vmatprep.subr.mxu0 0.0
        %817 = vmatpush1.msra.mxu0 0.0
        %818 = vmatprep.subr.mxu0 0.0
        %819 = vmatpush1.msra.mxu0 0.0
        %820 = vmatprep.subr.mxu0 0.0
        %821 = vmatpush1.msra.mxu0 0.0
        %822 = vmatprep.subr.mxu0 0.0
        %823 = vmatpush1.msra.mxu0 0.0
        %824 = vmatprep.subr.mxu0 0.0
        %825 = vmatpush1.msra.mxu0 0.0
        %826 = vmatprep.subr.mxu0 0.0
        %827 = vmatpush1.msra.mxu0 0.0
        %828 = vmatprep.subr.mxu0 0.0
        %829 = vmatpush1.msra.mxu0 0.0
        %830 = vmatprep.subr.mxu0 0.0
        %831 = vmatpush1.msra.mxu0 0.0
        %832 = vmatprep.subr.mxu0 0.0
        %833 = vmatpush1.msra.mxu0 0.0
        %834 = vmatprep.subr.mxu0 0.0
        %835 = vmatpush1.msra.mxu0 0.0
        %836 = vmatprep.subr.mxu0 0.0
        %837 = vmatpush1.msra.mxu0 0.0
        %838 = vmatprep.subr.mxu0 0.0
        %839 = vmatpush1.msra.mxu0 0.0
        %840 = vmatprep.subr.mxu0 0.0
        %841 = vmatpush1.msra.mxu0 0.0
        %842 = vmatprep.subr.mxu0 0.0
        %843 = vmatpush1.msra.mxu0 0.0
        %844 = vmatprep.subr.mxu0 0.0
        %845 = vmatpush1.msra.mxu0 0.0
        %846 = vmatprep.mubr.f32.mxu0 0.0
        %847 = vmatmul.mubr.f32.gmra.mrb[0].mxu0 %v670
        %v848 = vpop.f32.mrb[0].mxu0
        %v849 = vadd.f32 %v705, %v848
        %v850 = vpop.f32.mrb[0].mxu0
        %851 = vmatprep.mubr.f32.mxu0 0.0
        %852 = vmatmul.mubr.f32.gmra.mrb[0].mxu0 %v671
        %v853 = vpop.f32.mrb[0].mxu0
        %v854 = vadd.f32 %v710, %v853
        %v855 = vpop.f32.mrb[0].mxu0
        %856 = vmatprep.mubr.f32.mxu0 0.0
        %857 = vmatmul.mubr.f32.gmra.mrb[0].mxu0 %v672
        %v858 = vpop.f32.mrb[0].mxu0
        %v859 = vadd.f32 %v715, %v858
        %v860 = vpop.f32.mrb[0].mxu0
        %861 = vmatprep.mubr.f32.mxu0 0.0
        %862 = vmatmul.mubr.f32.gmra.mrb[0].mxu0 %v673
        %v863 = vpop.f32.mrb[0].mxu0
        %v864 = vadd.f32 %v720, %v863
        %v865 = vpop.f32.mrb[0].mxu0
        %866 = vmatprep.mubr.f32.mxu0 0.0
        %867 = vmatmul.mubr.f32.gmra.mrb[0].mxu0 %v674
        %v868 = vpop.f32.mrb[0].mxu0
        %v869 = vadd.f32 %v725, %v868
        %v870 = vpop.f32.mrb[0].mxu0
        %871 = vmatprep.mubr.f32.mxu0 0.0
        %872 = vmatmul.mubr.f32.gmra.mrb[0].mxu0 %v675
        %v873 = vpop.f32.mrb[0].mxu0
        %v874 = vadd.f32 %v730, %v873
        %v875 = vpop.f32.mrb[0].mxu0
        %876 = vmatprep.mubr.f32.mxu0 0.0
        %877 = vmatmul.mubr.f32.gmra.mrb[0].mxu0 %v676
        %v878 = vpop.f32.mrb[0].mxu0
        %v879 = vadd.f32 %v735, %v878
        %v880 = vpop.f32.mrb[0].mxu0
        %881 = vmatprep.mubr.f32.mxu0 0.0
        %882 = vmatmul.mubr.f32.gmra.mrb[0].mxu0 %v677
        %v883 = vpop.f32.mrb[0].mxu0
        %v884 = vadd.f32 %v740, %v883
        %v885 = vpop.f32.mrb[0].mxu0
        %886 = vmatprep.mubr.f32.mxu0 0.0
        %887 = vmatmul.mubr.f32.gmra.mrb[0].mxu0 %v678
        %v888 = vpop.f32.mrb[0].mxu0
        %v889 = vadd.f32 %v745, %v888
        %v890 = vpop.f32.mrb[0].mxu0
        %891 = vmatprep.mubr.f32.mxu0 0.0
        %892 = vmatmul.mubr.f32.gmra.mrb[0].mxu0 %v679
        %v893 = vpop.f32.mrb[0].mxu0
        %v894 = vadd.f32 %v750, %v893
        %v895 = vpop.f32.mrb[0].mxu0
        %896 = vmatprep.mubr.f32.mxu0 0.0
        %897 = vmatmul.mubr.f32.gmra.mrb[0].mxu0 %v680
        %v898 = vpop.f32.mrb[0].mxu0
        %v899 = vadd.f32 %v755, %v898
        %v900 = vpop.f32.mrb[0].mxu0
        %901 = vmatprep.mubr.f32.mxu0 0.0
        %902 = vmatmul.mubr.f32.gmra.mrb[0].mxu0 %v681
        %v903 = vpop.f32.mrb[0].mxu0
        %v904 = vadd.f32 %v760, %v903
        %v905 = vpop.f32.mrb[0].mxu0
        %906 = vmatprep.mubr.f32.mxu0 0.0
        %907 = vmatmul.mubr.f32.gmra.mrb[0].mxu0 %v682
        %v908 = vpop.f32.mrb[0].mxu0
        %v909 = vadd.f32 %v765, %v908
        %v910 = vpop.f32.mrb[0].mxu0
        %911 = vmatprep.mubr.f32.mxu0 0.0
        %912 = vmatmul.mubr.f32.gmra.mrb[0].mxu0 %v683
        %v913 = vpop.f32.mrb[0].mxu0
        %v914 = vadd.f32 %v770, %v913
        %v915 = vpop.f32.mrb[0].mxu0
        %916 = vmatprep.mubr.f32.mxu0 0.0
        %917 = vmatmul.mubr.f32.gmra.mrb[0].mxu0 %v684
        %v918 = vpop.f32.mrb[0].mxu0
        %v919 = vadd.f32 %v775, %v918
        %v920 = vpop.f32.mrb[0].mxu0
        %921 = vmatprep.mubr.f32.mxu0 0.0
        %922 = vmatmul.mubr.f32.gmra.mrb[0].mxu0 %v685
        %v923 = vpop.f32.mrb[0].mxu0
        %v924 = vadd.f32 %v780, %v923
        %v925 = vpop.f32.mrb[0].mxu0
        %926 = vdwg.mxu0
        %v927 = vmax.f32 %v849, 0.0
        %v928 = vmax.f32 %v854, 0.0
        %v929 = vmax.f32 %v859, 0.0
        %v930 = vmax.f32 %v864, 0.0
        %v931 = vmax.f32 %v869, 0.0
        %v932 = vmax.f32 %v874, 0.0
        %v933 = vmax.f32 %v879, 0.0
        %v934 = vmax.f32 %v884, 0.0
        %v935 = vmax.f32 %v889, 0.0
        %v936 = vmax.f32 %v894, 0.0
        %v937 = vmax.f32 %v899, 0.0
        %v938 = vmax.f32 %v904, 0.0
        %v939 = vmax.f32 %v909, 0.0
        %v940 = vmax.f32 %v914, 0.0
        %v941 = vmax.f32 %v919, 0.0
        %v942 = vmax.f32 %v924, 0.0
        %v943 = vld [vmem:[%s5] sm:$0x1]
        %v944 = vld [vmem:[#allocation2] sm:$0x1]
        %946 = vset.pattern.permute.xlu0 0
        %947 = vperm.xlu0 %946, %v944
        %v948 = vpop.permute.xlu0 %947
        %v950 = vlaneseq
        %v951 = vshrl.u32 %v950, 7
        %v952 = vsub.s32 0, %v951
        %v953 = vrot.slane %v948, %v952
        %954 = vmatprep.subr.mxu0 0.0
        %955 = vmatpush1.msra.mxu0 %v927
        %956 = vmatprep.subr.mxu0 0.0
        %957 = vmatpush1.msra.mxu0 %v928
        %958 = vmatprep.subr.mxu0 0.0
        %959 = vmatpush1.msra.mxu0 %v929
        %960 = vmatprep.subr.mxu0 0.0
        %961 = vmatpush1.msra.mxu0 %v930
        %962 = vmatprep.subr.mxu0 0.0
        %963 = vmatpush1.msra.mxu0 %v931
        %964 = vmatprep.subr.mxu0 0.0
        %965 = vmatpush1.msra.mxu0 %v932
        %966 = vmatprep.subr.mxu0 0.0
        %967 = vmatpush1.msra.mxu0 %v933
        %968 = vmatprep.subr.mxu0 0.0
        %969 = vmatpush1.msra.mxu0 %v934
        %970 = vmatprep.subr.mxu0 0.0
        %971 = vmatpush1.msra.mxu0 %v935
        %972 = vmatprep.subr.mxu0 0.0
        %973 = vmatpush1.msra.mxu0 %v936
        %974 = vmatprep.subr.mxu0 0.0
        %975 = vmatpush1.msra.mxu0 %v937
        %976 = vmatprep.subr.mxu0 0.0
        %977 = vmatpush1.msra.mxu0 %v938
        %978 = vmatprep.subr.mxu0 0.0
        %979 = vmatpush1.msra.mxu0 %v939
        %980 = vmatprep.subr.mxu0 0.0
        %981 = vmatpush1.msra.mxu0 %v940
        %982 = vmatprep.subr.mxu0 0.0
        %983 = vmatpush1.msra.mxu0 %v941
        %984 = vmatprep.subr.mxu0 0.0
        %985 = vmatpush1.msra.mxu0 %v942
        %986 = vmatprep.subr.mxu0 0.0
        %987 = vmatpush1.msra.mxu0 0.0
        %988 = vmatprep.subr.mxu0 0.0
        %989 = vmatpush1.msra.mxu0 0.0
        %990 = vmatprep.subr.mxu0 0.0
        %991 = vmatpush1.msra.mxu0 0.0
        %992 = vmatprep.subr.mxu0 0.0
        %993 = vmatpush1.msra.mxu0 0.0
        %994 = vmatprep.subr.mxu0 0.0
        %995 = vmatpush1.msra.mxu0 0.0
        %996 = vmatprep.subr.mxu0 0.0
        %997 = vmatpush1.msra.mxu0 0.0
        %998 = vmatprep.subr.mxu0 0.0
        %999 = vmatpush1.msra.mxu0 0.0
        %1000 = vmatprep.subr.mxu0 0.0
        %1001 = vmatpush1.msra.mxu0 0.0
        %1002 = vmatprep.subr.mxu0 0.0
        %1003 = vmatpush1.msra.mxu0 0.0
        %1004 = vmatprep.subr.mxu0 0.0
        %1005 = vmatpush1.msra.mxu0 0.0
        %1006 = vmatprep.subr.mxu0 0.0
        %1007 = vmatpush1.msra.mxu0 0.0
        %1008 = vmatprep.subr.mxu0 0.0
        %1009 = vmatpush1.msra.mxu0 0.0
        %1010 = vmatprep.subr.mxu0 0.0
        %1011 = vmatpush1.msra.mxu0 0.0
        %1012 = vmatprep.subr.mxu0 0.0
        %1013 = vmatpush1.msra.mxu0 0.0
        %1014 = vmatprep.subr.mxu0 0.0
        %1015 = vmatpush1.msra.mxu0 0.0
        %1016 = vmatprep.subr.mxu0 0.0
        %1017 = vmatpush1.msra.mxu0 0.0
        %1018 = vmatprep.mubr.f32.mxu0 0.0
        %1019 = vmatmul.mubr.f32.gmra.mrb[0].mxu0 %v943
        %v1020 = vpop.f32.mrb[0].mxu0
        %v1021 = vadd.f32 %v953, %v1020
        %v1022 = vpop.f32.mrb[0].mxu0
        %1023 = vdwg.mxu0
        %1024 = vst [vmem:[%s339] sm:$0x1] %v1021
        %s1025 = sand.u32 %s183, 1
        %s1026 = scalar_lea.sflag [#allocation5], %s1025
        %s1027 = sand.u32 %s183, 1
        %s1028 = scalar_lea.vmem [#allocation4], %s1027
        // Predicated region
        $region87: #{tpu_custom_call.1} parent=81 // pred_check
          %p1029 = pneg %p193
        $region88: #{tpu_custom_call.1} parent=81 // pred_check_branch
          %1031 = sbr.rel (%p1029) target = $region90
        $region89: #{tpu_custom_call.1} parent=81 // pred_region
          %s1033 = ssub.s32 16, 16
          %1034 = vsyncadd %s1026, %s1033
          %s1035 = smul.addr %s23, 16
          %s1036 = scalar_lea.hbm %s7, %s1035
          %s1038 = sshll.u32 %s1028, 4
          %s1039 = int_to_ptr.vmem [resolvable:$true] %s1038
          %1041 = dma.vmem_to_hbm [thread:$0]  %s1039, 16, %s1036, %s1026
        $region90: #{tpu_custom_call.1} parent=81 // pred_fallthru
          _
      $region82: #{tpu_custom_call.1} parent=5 // pred_fallthru
        _
      %p1042 = scmp.le.s32.totalorder 2, %s18
      // Predicated region
      $region91: #{tpu_custom_call.1} parent=5 // pred_check
        %p1043 = pneg %p1042
      $region92: #{tpu_custom_call.1} parent=5 // pred_check_branch
        %1045 = sbr.rel (%p1043) target = $region94
      $region93: #{tpu_custom_call.1} parent=5 // pred_region
        %s1046 = ssub.s32 %s18, 2
        // Predicated region
        $region95: #{tpu_custom_call.1} parent=93 // pred_check
          %p1047 = pneg %p199
        $region96: #{tpu_custom_call.1} parent=93 // pred_check_branch
          %1049 = sbr.rel (%p1047) target = $region98
        $region97: #{tpu_custom_call.1} parent=93 // pred_region
          %s1050 = sand.u32 %s184, 1
          %s1051 = scalar_lea.sflag [#allocation5], %s1050
          %s1052 = sand.u32 %s184, 1
          %s1053 = scalar_lea.vmem [#allocation4], %s1052
          %1054 = dma.done %s1051, 16
        $region98: #{tpu_custom_call.1} parent=93 // pred_fallthru
          _
      $region94: #{tpu_custom_call.1} parent=5 // pred_fallthru
        _
    $region6: #{tpu_custom_call.1} parent=1 // loop_footer
      %s22 = sadd.s32 1, %s18
    $region7: #{tpu_custom_call.1} parent=1 // loop_footer_branch
      %17 = sbr.rel target = $region3
    $region8: #{tpu_custom_call.1} parent=1 // loop_exit
      _
    %1055 = vsyncpa [#allocation5], 1
    %s1056 = scalar_lea.sflag [#allocation5], 1
    %1057 = vsyncpa %s1056, 1

</llo_original>
